<compile_context>
chip_gen: v6e
topology: v6e:2x2x1
jax: 0.10.0
libtpu: 0.0.40
codegen_flags: <defaults>
</compile_context>

<pallas_src>
import jax
import jax.numpy as jnp
from jax import lax
from jax.experimental import pallas as pl
from jax.experimental.pallas import tpu as pltpu

_HIDDEN = 256


def _value_kernel(x_ref, w1_ref, b1_ref, w2_ref, b2_ref, w3_ref, b3_ref, o_ref):
    # Layer 1: bf16 MXU matmul, f32 accumulate; bias + ReLU in bf16.
    x = x_ref[...].astype(jnp.bfloat16)
    h1 = jnp.dot(x, w1_ref[...], preferred_element_type=jnp.float32)
    h1 = jnp.maximum(h1.astype(jnp.bfloat16) + b1_ref[...], 0)

    # Layer 2: same recipe; h1 is already bf16, no extra cast pass.
    h2 = jnp.dot(h1, w2_ref[...], preferred_element_type=jnp.float32)
    h2 = jnp.maximum(h2.astype(jnp.bfloat16) + b2_ref[...], 0)

    # Layer 3 (out_features = 1): MXU matmul with trans_b dimension numbers,
    # contracting the hidden dim of both operands.  Result is (1, tm) with the
    # batch in the LANE axis -> lane-dense output store.
    v = lax.dot_general(
        w3_ref[...], h2,
        dimension_numbers=(((1,), (1,)), ((), ())),
        preferred_element_type=jnp.float32)            # (1, tm) f32
    o_ref[...] = (v + b3_ref[...]).astype(o_ref.dtype)


def _round_up(x, m):
    return ((x + m - 1) // m) * m


def _pick_tile(B):
    # Total footprint (weights ~140 KB + (tm, 256) bf16 intermediates) is well
    # under VMEM even at tm=1024 on every gen (incl. v7x's 64 MiB), so pick the
    # largest tile that amortizes the ~0.35 us per-grid-step overhead while
    # keeping >= 2 grid steps for dual-TensorCore sharding on v7x.
    if B < 512:
        return B                                     # single full-array block
    return min(1024, _round_up(max(256, B // 2), 256))


def value_forward(state, params):
    """state: (B, state_dim) float32  ->  (B, 1) float32."""
    w1, b1 = params["w1"], params["b1"]
    w2, b2 = params["w2"], params["b2"]
    w3, b3 = params["w3"], params["b3"]
    B, D = state.shape
    H = w2.shape[0]

    tm = _pick_tile(B)
    n_tiles = pl.cdiv(B, tm)        # ragged last block; no pad/slice round-trip

    def full(arr):
        return pl.BlockSpec(arr.shape, lambda i: (0,) * arr.ndim)

    cost = pl.CostEstimate(
        flops=2 * B * H * (D + H + 1),
        transcendentals=0,
        bytes_accessed=(B * D * 4                       # state
                        + (D * H + H * H + 2 * H) * 2   # bf16 weights/biases
                        + 4                             # b3
                        + n_tiles * tm * 4),            # output
    )

    out = pl.pallas_call(
        _value_kernel,
        out_shape=jax.ShapeDtypeStruct((n_tiles, tm), jnp.float32),
        grid=(n_tiles,),
        in_specs=[
            pl.BlockSpec((tm, D), lambda i: (i, 0)),    # state, tiled on batch
            full(w1), full(b1),
            full(w2), full(b2),
            full(w3), full(b3),
        ],
        out_specs=pl.BlockSpec((1, tm), lambda i: (i, 0)),   # lane-dense rows
        compiler_params=pltpu.CompilerParams(
            dimension_semantics=("parallel",)),
        cost_estimate=cost,
    )(state, w1, b1, w2, b2, w3, b3)

    # (n_tiles, tm) lane-dense rows -> (B, 1).  Tail lanes of a ragged last
    # tile (from OOB input rows) are dropped here; rows are independent, so
    # they cannot contaminate valid outputs.
    return out.reshape(-1)[:B].reshape(B, 1)


def init_value_params(key, state_dim, hidden=_HIDDEN):
    """PyTorch nn.Linear default init (uniform +-1/sqrt(fan_in)).
    Weights stored transposed (in_features, out_features).  Layer 1/2 weights
    and biases are bf16 (MXU-native inputs, bf16 bias/ReLU path); layer-3
    weight is a bf16 (1, hidden) row used as a trans_b MXU operand; b3 f32."""
    ks = jax.random.split(key, 6)

    def linear(kw, kb, fan_in, fan_out):
        bound = 1.0 / jnp.sqrt(jnp.float32(fan_in))
        w = jax.random.uniform(kw, (fan_in, fan_out), jnp.float32, -bound, bound)
        b = jax.random.uniform(kb, (1, fan_out), jnp.float32, -bound, bound)
        return w, b

    w1, b1 = linear(ks[0], ks[1], state_dim, hidden)
    w2, b2 = linear(ks[2], ks[3], hidden, hidden)
    w3, b3 = linear(ks[4], ks[5], hidden, 1)

    return {
        "w1": w1.astype(jnp.bfloat16), "b1": b1.astype(jnp.bfloat16),
        "w2": w2.astype(jnp.bfloat16), "b2": b2.astype(jnp.bfloat16),
        "w3": w3.T.astype(jnp.bfloat16),   # (1, hidden) bf16 row
        "b3": b3,                          # (1, 1) f32
    }


def _reference(state, params):
    """Plain-JAX reference using the same numerics as the kernel."""
    h1 = jnp.dot(state.astype(jnp.bfloat16), params["w1"],
                 preferred_element_type=jnp.float32)
    h1 = jnp.maximum(h1.astype(jnp.bfloat16) + params["b1"], 0)
    h2 = jnp.dot(h1, params["w2"], preferred_element_type=jnp.float32)
    h2 = jnp.maximum(h2.astype(jnp.bfloat16) + params["b2"], 0)
    v = lax.dot_general(params["w3"], h2, (((1,), (1,)), ((), ())),
                        preferred_element_type=jnp.float32) + params["b3"]
    return v.reshape(-1, 1)


if __name__ == "__main__":
    key = jax.random.PRNGKey(0)
    k_state, k_params, k_big = jax.random.split(key, 3)

    state_dim = 24  # e.g. 20 laser bins + dist/angle + prev action (TD3 robot nav)
    params = init_value_params(k_params, state_dim)

    # Small batch: single full-array block, grid=(1,).
    state = jax.random.normal(k_state, (8, state_dim), dtype=jnp.float32)
    v = jax.block_until_ready(value_forward(state, params))
    ref = _reference(state, params)
    assert v.shape == (8, 1)
    assert jnp.allclose(v, ref, atol=1e-2, rtol=1e-2)

    # Larger batch: multi-tile parallel grid with a ragged last input block,
    # exercising the lane-dense (1, tm) output path.
    big = jax.random.normal(k_big, (600, state_dim), dtype=jnp.float32)
    vb = jax.block_until_ready(value_forward(big, params))
    refb = _reference(big, params)
    assert vb.shape == (600, 1)
    assert jnp.allclose(vb, refb, atol=1e-2, rtol=1e-2)

    print("KERNEL_OK")
</pallas_src>

<mosaic_0001>
module attributes {stable_mosaic.version = 11 : i64} {
  func.func @_value_kernel(%arg0: i32, %arg1: memref<8x24xf32, #tpu.memory_space<vmem>>, %arg2: memref<24x256xbf16, #tpu.memory_space<vmem>>, %arg3: memref<1x256xbf16, #tpu.memory_space<vmem>>, %arg4: memref<256x256xbf16, #tpu.memory_space<vmem>>, %arg5: memref<1x256xbf16, #tpu.memory_space<vmem>>, %arg6: memref<1x256xbf16, #tpu.memory_space<vmem>>, %arg7: memref<1x1xf32, #tpu.memory_space<vmem>>, %arg8: memref<1x8xf32, #tpu.memory_space<vmem>>) attributes {dimension_semantics = [#tpu.dimension_semantics<parallel>], iteration_bounds = array<i64: 1>, scalar_prefetch = 0 : i64, scratch_operands = 0 : i64, tpu.core_type = #tpu.core_type<tc>, window_params = [{transform_indices = @transform_0, window_bounds = array<i64: 8, 24>}, {pipeline_mode = #tpu.pipeline_mode<synchronous>, transform_indices = @transform_1, window_bounds = array<i64: 24, 256>}, {pipeline_mode = #tpu.pipeline_mode<synchronous>, transform_indices = @transform_2, window_bounds = array<i64: 1, 256>}, {pipeline_mode = #tpu.pipeline_mode<synchronous>, transform_indices = @transform_3, window_bounds = array<i64: 256, 256>}, {pipeline_mode = #tpu.pipeline_mode<synchronous>, transform_indices = @transform_4, window_bounds = array<i64: 1, 256>}, {pipeline_mode = #tpu.pipeline_mode<synchronous>, transform_indices = @transform_5, window_bounds = array<i64: 1, 256>}, {pipeline_mode = #tpu.pipeline_mode<synchronous>, transform_indices = @transform_6, window_bounds = array<i64: 1, 1>}, {transform_indices = @transform_7, window_bounds = array<i64: 1, 8>}]} {
    %c0 = arith.constant 0 : index
    %c0_0 = arith.constant 0 : index
    %0 = vector.load %arg1[%c0, %c0_0] : memref<8x24xf32, #tpu.memory_space<vmem>>, vector<8x24xf32>
    %1 = arith.truncf %0 : vector<8x24xf32> to vector<8x24xbf16>
    %c0_1 = arith.constant 0 : index
    %c0_2 = arith.constant 0 : index
    %2 = vector.load %arg2[%c0_1, %c0_2] : memref<24x256xbf16, #tpu.memory_space<vmem>>, vector<24x256xbf16>
    %cst = arith.constant dense<0.000000e+00> : vector<8x256xf32>
    %3 = tpu.matmul %1, %2, %cst {dimension_numbers = #tpu.dot_dimension_numbers<[1], [0], [0], [1], [0, 0, 1, 1], [], []>} : vector<8x24xbf16>, vector<24x256xbf16>, vector<8x256xf32> -> vector<8x256xf32>
    %4 = arith.truncf %3 : vector<8x256xf32> to vector<8x256xbf16>
    %c0_3 = arith.constant 0 : index
    %c0_4 = arith.constant 0 : index
    %5 = vector.load %arg3[%c0_3, %c0_4] : memref<1x256xbf16, #tpu.memory_space<vmem>>, vector<1x256xbf16>
    %6 = vector.broadcast %5 : vector<1x256xbf16> to vector<8x256xbf16>
    %7 = arith.addf %4, %6 : vector<8x256xbf16>
    %cst_5 = arith.constant 0.000000e+00 : bf16
    %8 = vector.broadcast %cst_5 : bf16 to vector<8x256xbf16>
    %9 = arith.maximumf %7, %8 : vector<8x256xbf16>
    %c0_6 = arith.constant 0 : index
    %c0_7 = arith.constant 0 : index
    %10 = vector.load %arg4[%c0_6, %c0_7] : memref<256x256xbf16, #tpu.memory_space<vmem>>, vector<256x256xbf16>
    %cst_8 = arith.constant dense<0.000000e+00> : vector<8x256xf32>
    %11 = tpu.matmul %9, %10, %cst_8 {dimension_numbers = #tpu.dot_dimension_numbers<[1], [0], [0], [1], [0, 0, 1, 1], [], []>} : vector<8x256xbf16>, vector<256x256xbf16>, vector<8x256xf32> -> vector<8x256xf32>
    %12 = arith.truncf %11 : vector<8x256xf32> to vector<8x256xbf16>
    %c0_9 = arith.constant 0 : index
    %c0_10 = arith.constant 0 : index
    %13 = vector.load %arg5[%c0_9, %c0_10] : memref<1x256xbf16, #tpu.memory_space<vmem>>, vector<1x256xbf16>
    %14 = vector.broadcast %13 : vector<1x256xbf16> to vector<8x256xbf16>
    %15 = arith.addf %12, %14 : vector<8x256xbf16>
    %cst_11 = arith.constant 0.000000e+00 : bf16
    %16 = vector.broadcast %cst_11 : bf16 to vector<8x256xbf16>
    %17 = arith.maximumf %15, %16 : vector<8x256xbf16>
    %c0_12 = arith.constant 0 : index
    %c0_13 = arith.constant 0 : index
    %18 = vector.load %arg6[%c0_12, %c0_13] : memref<1x256xbf16, #tpu.memory_space<vmem>>, vector<1x256xbf16>
    %cst_14 = arith.constant dense<0.000000e+00> : vector<1x8xf32>
    %19 = tpu.matmul %18, %17, %cst_14 {dimension_numbers = #tpu.dot_dimension_numbers<[1], [1], [0], [0], [0, 0, 1, 0], [], []>} : vector<1x256xbf16>, vector<8x256xbf16>, vector<1x8xf32> -> vector<1x8xf32>
    %c0_15 = arith.constant 0 : index
    %c0_16 = arith.constant 0 : index
    %20 = vector.load %arg7[%c0_15, %c0_16] : memref<1x1xf32, #tpu.memory_space<vmem>>, vector<1x1xf32>
    %21 = vector.broadcast %20 : vector<1x1xf32> to vector<1x8xf32>
    %22 = arith.addf %19, %21 : vector<1x8xf32>
    %c0_17 = arith.constant 0 : index
    %c0_18 = arith.constant 0 : index
    %23 = vector.load %arg8[%c0_17, %c0_18] : memref<1x8xf32, #tpu.memory_space<vmem>>, vector<1x8xf32>
    tpu.vector_store %arg8[%c0_17, %c0_18], %22 {strides = array<i32>} : memref<1x8xf32, #tpu.memory_space<vmem>>, vector<1x8xf32>,
    return
  }
  func.func @transform_0(%arg0: i32) -> (i32, i32) {
    %c0_i32 = arith.constant 0 : i32
    %c0_i32_0 = arith.constant 0 : i32
    return %arg0, %c0_i32 : i32, i32
  }
  func.func @transform_1(%arg0: i32) -> (i32, i32) {
    %c0_i32 = arith.constant 0 : i32
    %c0_i32_0 = arith.constant 0 : i32
    %c0_i32_1 = arith.constant 0 : i32
    return %c0_i32, %c0_i32_0 : i32, i32
  }
  func.func @transform_2(%arg0: i32) -> (i32, i32) {
    %c0_i32 = arith.constant 0 : i32
    %c0_i32_0 = arith.constant 0 : i32
    %c0_i32_1 = arith.constant 0 : i32
    return %c0_i32, %c0_i32_0 : i32, i32
  }
  func.func @transform_3(%arg0: i32) -> (i32, i32) {
    %c0_i32 = arith.constant 0 : i32
    %c0_i32_0 = arith.constant 0 : i32
    %c0_i32_1 = arith.constant 0 : i32
    return %c0_i32, %c0_i32_0 : i32, i32
  }
  func.func @transform_4(%arg0: i32) -> (i32, i32) {
    %c0_i32 = arith.constant 0 : i32
    %c0_i32_0 = arith.constant 0 : i32
    %c0_i32_1 = arith.constant 0 : i32
    return %c0_i32, %c0_i32_0 : i32, i32
  }
  func.func @transform_5(%arg0: i32) -> (i32, i32) {
    %c0_i32 = arith.constant 0 : i32
    %c0_i32_0 = arith.constant 0 : i32
    %c0_i32_1 = arith.constant 0 : i32
    return %c0_i32, %c0_i32_0 : i32, i32
  }
  func.func @transform_6(%arg0: i32) -> (i32, i32) {
    %c0_i32 = arith.constant 0 : i32
    %c0_i32_0 = arith.constant 0 : i32
    %c0_i32_1 = arith.constant 0 : i32
    return %c0_i32, %c0_i32_0 : i32, i32
  }
  func.func @transform_7(%arg0: i32) -> (i32, i32) {
    %c0_i32 = arith.constant 0 : i32
    %c0_i32_0 = arith.constant 0 : i32
    return %arg0, %c0_i32 : i32, i32
  }
}

</mosaic_0001>

<llo_original>
// kernel: tpu_custom_call.1
$region0: #{tpu_custom_call.1}
  #allocation0 [shape = 'u32[]', space=smem, size = 0x4, offset = 0x4, fixed_abs, tag = 'smem constant byte address 0x4 - core index']
  #allocation1 [shape = 'u32[144,128]{1,0:T(1,128)}', space=vmem, size = 0x12000, scoped, tag = 'internal scratch']
  #allocation2 [shape = 'f32[1,1]{1,0:T(1,128)S(1)}', space=vmem, size = 0x200, scoped, tag = 'scoped memory for tpu_custom_call.1']
  %s0 = inlined_call_operand.hbm [shape: f32[8,24], index: 0, kind: input, shape index: {}]
  %s1 = inlined_call_operand.hbm [shape: bf16[24,256], index: 1, kind: input, shape index: {}]
  %s2 = inlined_call_operand.vmem [shape: bf16[1,256], index: 2, kind: input, shape index: {}]
  %s3 = inlined_call_operand.hbm [shape: bf16[256,256], index: 3, kind: input, shape index: {}]
  %s4 = inlined_call_operand.vmem [shape: bf16[1,256], index: 4, kind: input, shape index: {}]
  %s5 = inlined_call_operand.vmem [shape: bf16[1,256], index: 5, kind: input, shape index: {}]
  %s6 = inlined_call_operand.<no memory space> [shape: f32[1,1], index: 6, kind: input, shape index: {}]
  %s7 = inlined_call_operand.hbm [shape: f32[1,8], index: 7, kind: output, shape index: {}]
  %s8 = sld [smem:[#allocation0]]
  $region50: #{tpu_custom_call.1} parent=0
    _
  %s10 = ssub.s32 1, %s8
  %s11 = scalar_select 0, %s10, %s8
  %v12 = vstv %s6
  %13 = vst [vmem:[#allocation2] sm:$0x1] %v12
  $region1: #{tpu_custom_call.1} parent=0
    #allocation3 [shape = 'u8[4096]{0}', space=vmem, size = 0x1000, scoped, tag = 'input window, operand 0, single buffered']
    #allocation4 [shape = 's32[1]{0}', space=sflag, size = 0x4, scoped, tag = 'scoped memory for tpu_custom_call.1']
    #allocation5 [shape = 's32[1]{0}', space=sflag, size = 0x4, scoped, tag = 'scoped memory for tpu_custom_call.1']
    #allocation6 [shape = 'u8[12288]{0}', space=vmem, size = 0x3000, scoped, tag = 'input window, operand 1, single buffered']
    #allocation7 [shape = 's32[1]{0}', space=sflag, size = 0x4, scoped, tag = 'scoped memory for tpu_custom_call.1']
    #allocation8 [shape = 'u8[131072]{0}', space=vmem, size = 0x20000, scoped, tag = 'input window, operand 3, single buffered']
    #allocation9 [shape = 'u8[512]{0}', space=vmem, size = 0x400, scoped, tag = 'output window, operand 0, single buffered']
    %14 = vsyncpa [#allocation4], 0
    %15 = vsyncpa [#allocation7], 0
    %16 = vsyncpa [#allocation5], 0
    // Predicated region
    $region2: #{tpu_custom_call.1} parent=1 // pred_check
      _
    $region3: #{tpu_custom_call.1} parent=1 // pred_check_branch
      %18 = sbr.rel (0) target = $region5
    $region4: #{tpu_custom_call.1} parent=1 // pred_region
      %s20 = ssub.s32 128, 128
      %21 = vsyncadd [#allocation4], %s20
      %s23 = sshll.u32 [#allocation3], 4
      %s24 = int_to_ptr.vmem [resolvable:$true] %s23
      %26 = dma.hbm_to_vmem [thread:$0]  %s0, 128, %s24, [#allocation4]
    $region5: #{tpu_custom_call.1} parent=1 // pred_fallthru
      _
    // Predicated region
    $region6: #{tpu_custom_call.1} parent=1 // pred_check
      _
    $region7: #{tpu_custom_call.1} parent=1 // pred_check_branch
      %28 = sbr.rel (0) target = $region9
    $region8: #{tpu_custom_call.1} parent=1 // pred_region
      %s30 = ssub.s32 384, 384
      %31 = vsyncadd [#allocation7], %s30
      %s32 = sshll.u32 [#allocation6], 4
      %s33 = int_to_ptr.vmem [resolvable:$true] %s32
      %38 = dma.hbm_to_vmem [thread:$0]  %s1, 384, %s33, [#allocation7], 128, 128, 8
    $region9: #{tpu_custom_call.1} parent=1 // pred_fallthru
      _
    // Predicated region
    $region10: #{tpu_custom_call.1} parent=1 // pred_check
      _
    $region11: #{tpu_custom_call.1} parent=1 // pred_check_branch
      %40 = sbr.rel (0) target = $region13
    $region12: #{tpu_custom_call.1} parent=1 // pred_region
      _
    $region13: #{tpu_custom_call.1} parent=1 // pred_fallthru
      _
    // Predicated region
    $region14: #{tpu_custom_call.1} parent=1 // pred_check
      _
    $region15: #{tpu_custom_call.1} parent=1 // pred_check_branch
      %42 = sbr.rel (0) target = $region17
    $region16: #{tpu_custom_call.1} parent=1 // pred_region
      %s44 = ssub.s32 4096, 4096
      %45 = vsyncadd [#allocation7], %s44
      %s46 = sshll.u32 [#allocation8], 4
      %s47 = int_to_ptr.vmem [resolvable:$true] %s46
      %52 = dma.hbm_to_vmem [thread:$0]  %s3, 4096, %s47, [#allocation7], 128, 128, 8
    $region17: #{tpu_custom_call.1} parent=1 // pred_fallthru
      _
    // Predicated region
    $region18: #{tpu_custom_call.1} parent=1 // pred_check
      _
    $region19: #{tpu_custom_call.1} parent=1 // pred_check_branch
      %54 = sbr.rel (0) target = $region21
    $region20: #{tpu_custom_call.1} parent=1 // pred_region
      _
    $region21: #{tpu_custom_call.1} parent=1 // pred_fallthru
      _
    // Predicated region
    $region22: #{tpu_custom_call.1} parent=1 // pred_check
      _
    $region23: #{tpu_custom_call.1} parent=1 // pred_check_branch
      %56 = sbr.rel (0) target = $region25
    $region24: #{tpu_custom_call.1} parent=1 // pred_region
      _
    $region25: #{tpu_custom_call.1} parent=1 // pred_fallthru
      _
    // Predicated region
    $region26: #{tpu_custom_call.1} parent=1 // pred_check
      _
    $region27: #{tpu_custom_call.1} parent=1 // pred_check_branch
      %58 = sbr.rel (0) target = $region29
    $region28: #{tpu_custom_call.1} parent=1 // pred_region
      _
    $region29: #{tpu_custom_call.1} parent=1 // pred_fallthru
      _
    // Predicated region
    $region30: #{tpu_custom_call.1} parent=1 // pred_check
      _
    $region31: #{tpu_custom_call.1} parent=1 // pred_check_branch
      %60 = sbr.rel (0) target = $region33
    $region32: #{tpu_custom_call.1} parent=1 // pred_region
      %61 = dma.done [#allocation4], 128
    $region33: #{tpu_custom_call.1} parent=1 // pred_fallthru
      _
    // Predicated region
    $region34: #{tpu_custom_call.1} parent=1 // pred_check
      _
    $region35: #{tpu_custom_call.1} parent=1 // pred_check_branch
      %63 = sbr.rel (0) target = $region37
    $region36: #{tpu_custom_call.1} parent=1 // pred_region
      %64 = dma.done [#allocation7], 384
    $region37: #{tpu_custom_call.1} parent=1 // pred_fallthru
      _
    // Predicated region
    $region38: #{tpu_custom_call.1} parent=1 // pred_check
      _
    $region39: #{tpu_custom_call.1} parent=1 // pred_check_branch
      %66 = sbr.rel (0) target = $region41
    $region40: #{tpu_custom_call.1} parent=1 // pred_region
      %67 = dma.done [#allocation7], 4096
    $region41: #{tpu_custom_call.1} parent=1 // pred_fallthru
      _
    %v69 = vld [vmem:[#allocation3] sm:$0xff]
    %v70 = vpack.c.bf16 %v69, %v69
    %v71 = vld [vmem:[#allocation6] sm:$0xff]
    %v72 = vld [vmem:[#allocation6 + $0x8] sm:$0xff]
    %v73 = vld [vmem:[#allocation6 + $0x10] sm:$0xff]
    %v77 = vunpack.c.l.b16 %v71
    %v78 = vunpack.c.h.b16 %v71
    %v79 = vunpack.c.l.b16 %v72
    %v80 = vunpack.c.h.b16 %v72
    %v81 = vunpack.c.l.b16 %v73
    %v82 = vunpack.c.h.b16 %v73
    %v83 = vpack.c.b16 %v79, %v77
    %v84 = vpack.c.b16 %v80, %v78
    %v85 = vpack.c.b16 %v81, %v81
    %v86 = vpack.c.b16 %v82, %v82
    %vm89 = vcmask 195584
    %v91 = vsel %vm89, %v70, 0
    %vm93 = vcmask 1043456
    %v95 = vsel %vm93, %v85, 0
    %v98 = vsel %vm93, %v86, 0
    %100 = vmatprep.subr.bf16.mxu0 0
    %101 = vmatpush1.bf16.msra.mxu0 0
    %102 = vmatprep.subr.bf16.mxu0 0
    %103 = vmatpush1.bf16.msra.mxu0 0
    %104 = vmatprep.subr.bf16.mxu0 0
    %105 = vmatpush1.bf16.msra.mxu0 0
    %106 = vmatprep.subr.bf16.mxu0 0
    %107 = vmatpush1.bf16.msra.mxu0 0
    %108 = vmatprep.subr.bf16.mxu0 0
    %109 = vmatpush1.bf16.msra.mxu0 0
    %110 = vmatprep.subr.bf16.mxu0 0
    %111 = vmatpush1.bf16.msra.mxu0 0
    %112 = vmatprep.subr.bf16.mxu0 %v98
    %113 = vmatpush1.bf16.msra.mxu0 %v95
    %114 = vmatprep.subr.bf16.mxu0 %v84
    %115 = vmatpush1.bf16.msra.mxu0 %v83
    %116 = vmatprep.subr.bf16.mxu0 0
    %117 = vmatpush2.bf16.msra.mxu0 0
    %118 = vmatprep.subr.bf16.mxu0 0
    %119 = vmatpush2.bf16.msra.mxu0 0
    %120 = vmatprep.subr.bf16.mxu0 0
    %121 = vmatpush2.bf16.msra.mxu0 0
    %122 = vmatprep.subr.bf16.mxu0 0
    %123 = vmatpush2.bf16.msra.mxu0 0
    %124 = vmatprep.subr.bf16.mxu0 0
    %125 = vmatpush2.bf16.msra.mxu0 0
    %126 = vmatprep.subr.bf16.mxu0 0
    %127 = vmatpush2.bf16.msra.mxu0 0
    %128 = vmatprep.subr.bf16.mxu0 0
    %129 = vmatpush2.bf16.msra.mxu0 0
    %130 = vmatprep.subr.bf16.mxu0 0
    %131 = vmatpush2.bf16.msra.mxu0 0
    %132 = vmatprep.mubr.bf16.mxu0 0
    %133 = vmatmul.mubr.bf16.gmra.mxu0 %v91
    %v134 = vpop.f32.mrf.mxu0
    %v135 = vadd.f32 0.0, %v134
    %v136 = vpop.f32.mrf.mxu0
    %v137 = vadd.f32 0.0, %v136
    %v138 = vpop.f32.mrf.mxu0
    %v139 = vpop.f32.mrf.mxu0
    %140 = vdwg.mxu0
    %v141 = vpack.c.bf16 %v135, %v135
    %v142 = vpack.c.bf16 %v137, %v137
    %v143 = vld [vmem:[%s2] sm:$0x3]
    %v146 = vunpack.c.l.s4 1966171168
    %v147 = vunpack.c.0.s8 %v146
    %v148 = vlaneseq
    %v149 = vshrl.u32 %v148, 7
    %v150 = vsub.s32 %v147, %v149
    %v151 = vrot.slane %v143, %v150
    %v152 = vcombine.high %v151, %v151
    %v154 = vunpack.c.l.s4 1966171168
    %v155 = vunpack.c.0.s8 %v154
    %v156 = vlaneseq
    %v157 = vshrl.u32 %v156, 7
    %v158 = vsub.s32 %v155, %v157
    %v159 = vrot.slane %v151, %v158
    %v161 = vunpack.c.l.s4 1966171168
    %v162 = vunpack.c.0.s8 %v161
    %v163 = vlaneseq
    %v164 = vshrl.u32 %v163, 7
    %v165 = vsub.s32 %v162, %v164
    %v166 = vrot.slane %v152, %v165
    %v168 = vpack.i.b16 %v159, %v159
    %v170 = vlaneseq
    %v171 = vshrl.u32 %v170, 7
    %v172 = vsub.s32 0, %v171
    %v173 = vrot.slane %v168, %v172
    %v175 = vpack.i.b16 %v166, %v166
    %v177 = vlaneseq
    %v178 = vshrl.u32 %v177, 7
    %v179 = vsub.s32 0, %v178
    %v180 = vrot.slane %v175, %v179
    %v181 = vadd.bf16 %v141, %v173
    %v182 = vadd.bf16 %v142, %v180
    %v183 = vmax.bf16 %v181, 0
    %v184 = vmax.bf16 %v182, 0
    %v185 = vld [vmem:[#allocation8] sm:$0xff]
    %v186 = vld [vmem:[#allocation8 + $0x8] sm:$0xff]
    %v187 = vld [vmem:[#allocation8 + $0x10] sm:$0xff]
    %v188 = vld [vmem:[#allocation8 + $0x18] sm:$0xff]
    %v189 = vld [vmem:[#allocation8 + $0x20] sm:$0xff]
    %v190 = vld [vmem:[#allocation8 + $0x28] sm:$0xff]
    %v191 = vld [vmem:[#allocation8 + $0x30] sm:$0xff]
    %v192 = vld [vmem:[#allocation8 + $0x38] sm:$0xff]
    %v193 = vld [vmem:[#allocation8 + $0x40] sm:$0xff]
    %v194 = vld [vmem:[#allocation8 + $0x48] sm:$0xff]
    %v195 = vld [vmem:[#allocation8 + $0x50] sm:$0xff]
    %v196 = vld [vmem:[#allocation8 + $0x58] sm:$0xff]
    %v197 = vld [vmem:[#allocation8 + $0x60] sm:$0xff]
    %v198 = vld [vmem:[#allocation8 + $0x68] sm:$0xff]
    %v199 = vld [vmem:[#allocation8 + $0x70] sm:$0xff]
    %v200 = vld [vmem:[#allocation8 + $0x78] sm:$0xff]
    %v201 = vld [vmem:[#allocation8 + $0x80] sm:$0xff]
    %v202 = vld [vmem:[#allocation8 + $0x88] sm:$0xff]
    %v203 = vld [vmem:[#allocation8 + $0x90] sm:$0xff]
    %v204 = vld [vmem:[#allocation8 + $0x98] sm:$0xff]
    %v205 = vld [vmem:[#allocation8 + $0xa0] sm:$0xff]
    %v206 = vld [vmem:[#allocation8 + $0xa8] sm:$0xff]
    %v207 = vld [vmem:[#allocation8 + $0xb0] sm:$0xff]
    %v208 = vld [vmem:[#allocation8 + $0xb8] sm:$0xff]
    %v209 = vld [vmem:[#allocation8 + $0xc0] sm:$0xff]
    %v210 = vld [vmem:[#allocation8 + $0xc8] sm:$0xff]
    %v211 = vld [vmem:[#allocation8 + $0xd0] sm:$0xff]
    %v212 = vld [vmem:[#allocation8 + $0xd8] sm:$0xff]
    %v213 = vld [vmem:[#allocation8 + $0xe0] sm:$0xff]
    %v214 = vld [vmem:[#allocation8 + $0xe8] sm:$0xff]
    %v215 = vld [vmem:[#allocation8 + $0xf0] sm:$0xff]
    %v216 = vld [vmem:[#allocation8 + $0xf8] sm:$0xff]
    %v249 = vunpack.c.l.b16 %v185
    %v250 = vunpack.c.h.b16 %v185
    %v251 = vunpack.c.l.b16 %v186
    %v252 = vunpack.c.h.b16 %v186
    %v253 = vunpack.c.l.b16 %v187
    %v254 = vunpack.c.h.b16 %v187
    %v255 = vunpack.c.l.b16 %v188
    %v256 = vunpack.c.h.b16 %v188
    %v257 = vunpack.c.l.b16 %v189
    %v258 = vunpack.c.h.b16 %v189
    %v259 = vunpack.c.l.b16 %v190
    %v260 = vunpack.c.h.b16 %v190
    %v261 = vunpack.c.l.b16 %v191
    %v262 = vunpack.c.h.b16 %v191
    %v263 = vunpack.c.l.b16 %v192
    %v264 = vunpack.c.h.b16 %v192
    %v265 = vunpack.c.l.b16 %v193
    %v266 = vunpack.c.h.b16 %v193
    %v267 = vunpack.c.l.b16 %v194
    %v268 = vunpack.c.h.b16 %v194
    %v269 = vunpack.c.l.b16 %v195
    %v270 = vunpack.c.h.b16 %v195
    %v271 = vunpack.c.l.b16 %v196
    %v272 = vunpack.c.h.b16 %v196
    %v273 = vunpack.c.l.b16 %v197
    %v274 = vunpack.c.h.b16 %v197
    %v275 = vunpack.c.l.b16 %v198
    %v276 = vunpack.c.h.b16 %v198
    %v277 = vunpack.c.l.b16 %v199
    %v278 = vunpack.c.h.b16 %v199
    %v279 = vunpack.c.l.b16 %v200
    %v280 = vunpack.c.h.b16 %v200
    %v281 = vunpack.c.l.b16 %v201
    %v282 = vunpack.c.h.b16 %v201
    %v283 = vunpack.c.l.b16 %v202
    %v284 = vunpack.c.h.b16 %v202
    %v285 = vunpack.c.l.b16 %v203
    %v286 = vunpack.c.h.b16 %v203
    %v287 = vunpack.c.l.b16 %v204
    %v288 = vunpack.c.h.b16 %v204
    %v289 = vunpack.c.l.b16 %v205
    %v290 = vunpack.c.h.b16 %v205
    %v291 = vunpack.c.l.b16 %v206
    %v292 = vunpack.c.h.b16 %v206
    %v293 = vunpack.c.l.b16 %v207
    %v294 = vunpack.c.h.b16 %v207
    %v295 = vunpack.c.l.b16 %v208
    %v296 = vunpack.c.h.b16 %v208
    %v297 = vunpack.c.l.b16 %v209
    %v298 = vunpack.c.h.b16 %v209
    %v299 = vunpack.c.l.b16 %v210
    %v300 = vunpack.c.h.b16 %v210
    %v301 = vunpack.c.l.b16 %v211
    %v302 = vunpack.c.h.b16 %v211
    %v303 = vunpack.c.l.b16 %v212
    %v304 = vunpack.c.h.b16 %v212
    %v305 = vunpack.c.l.b16 %v213
    %v306 = vunpack.c.h.b16 %v213
    %v307 = vunpack.c.l.b16 %v214
    %v308 = vunpack.c.h.b16 %v214
    %v309 = vunpack.c.l.b16 %v215
    %v310 = vunpack.c.h.b16 %v215
    %v311 = vunpack.c.l.b16 %v216
    %v312 = vunpack.c.h.b16 %v216
    %v313 = vpack.c.b16 %v251, %v249
    %v314 = vpack.c.b16 %v252, %v250
    %v315 = vpack.c.b16 %v255, %v253
    %v316 = vpack.c.b16 %v256, %v254
    %v317 = vpack.c.b16 %v259, %v257
    %v318 = vpack.c.b16 %v260, %v258
    %v319 = vpack.c.b16 %v263, %v261
    %v320 = vpack.c.b16 %v264, %v262
    %v321 = vpack.c.b16 %v267, %v265
    %v322 = vpack.c.b16 %v268, %v266
    %v323 = vpack.c.b16 %v271, %v269
    %v324 = vpack.c.b16 %v272, %v270
    %v325 = vpack.c.b16 %v275, %v273
    %v326 = vpack.c.b16 %v276, %v274
    %v327 = vpack.c.b16 %v279, %v277
    %v328 = vpack.c.b16 %v280, %v278
    %v329 = vpack.c.b16 %v283, %v281
    %v330 = vpack.c.b16 %v284, %v282
    %v331 = vpack.c.b16 %v287, %v285
    %v332 = vpack.c.b16 %v288, %v286
    %v333 = vpack.c.b16 %v291, %v289
    %v334 = vpack.c.b16 %v292, %v290
    %v335 = vpack.c.b16 %v295, %v293
    %v336 = vpack.c.b16 %v296, %v294
    %v337 = vpack.c.b16 %v299, %v297
    %v338 = vpack.c.b16 %v300, %v298
    %v339 = vpack.c.b16 %v303, %v301
    %v340 = vpack.c.b16 %v304, %v302
    %v341 = vpack.c.b16 %v307, %v305
    %v342 = vpack.c.b16 %v308, %v306
    %v343 = vpack.c.b16 %v311, %v309
    %v344 = vpack.c.b16 %v312, %v310
    %377 = vmatprep.subr.bf16.mxu0 %v328
    %378 = vmatpush1.bf16.msra.mxu0 %v327
    %379 = vmatprep.subr.bf16.mxu0 %v326
    %380 = vmatpush1.bf16.msra.mxu0 %v325
    %381 = vmatprep.subr.bf16.mxu0 %v324
    %382 = vmatpush1.bf16.msra.mxu0 %v323
    %383 = vmatprep.subr.bf16.mxu0 %v322
    %384 = vmatpush1.bf16.msra.mxu0 %v321
    %385 = vmatprep.subr.bf16.mxu0 %v320
    %386 = vmatpush1.bf16.msra.mxu0 %v319
    %387 = vmatprep.subr.bf16.mxu0 %v318
    %388 = vmatpush1.bf16.msra.mxu0 %v317
    %389 = vmatprep.subr.bf16.mxu0 %v316
    %390 = vmatpush1.bf16.msra.mxu0 %v315
    %391 = vmatprep.subr.bf16.mxu0 %v314
    %392 = vmatpush1.bf16.msra.mxu0 %v313
    %393 = vmatprep.subr.bf16.mxu0 %v344
    %394 = vmatpush2.bf16.msra.mxu0 %v343
    %395 = vmatprep.subr.bf16.mxu0 %v342
    %396 = vmatpush2.bf16.msra.mxu0 %v341
    %397 = vmatprep.subr.bf16.mxu0 %v340
    %398 = vmatpush2.bf16.msra.mxu0 %v339
    %399 = vmatprep.subr.bf16.mxu0 %v338
    %400 = vmatpush2.bf16.msra.mxu0 %v337
    %401 = vmatprep.subr.bf16.mxu0 %v336
    %402 = vmatpush2.bf16.msra.mxu0 %v335
    %403 = vmatprep.subr.bf16.mxu0 %v334
    %404 = vmatpush2.bf16.msra.mxu0 %v333
    %405 = vmatprep.subr.bf16.mxu0 %v332
    %406 = vmatpush2.bf16.msra.mxu0 %v331
    %407 = vmatprep.subr.bf16.mxu0 %v330
    %408 = vmatpush2.bf16.msra.mxu0 %v329
    %409 = vmatprep.mubr.bf16.mxu0 %v184
    %410 = vmatmul.mubr.bf16.gmra.mxu0 %v183
    %v411 = vpop.f32.mrf.mxu0
    %v412 = vadd.f32 0.0, %v411
    %v413 = vpop.f32.mrf.mxu0
    %v414 = vadd.f32 0.0, %v413
    %v415 = vpop.f32.mrf.mxu0
    %v416 = vpop.f32.mrf.mxu0
    %417 = vdwg.mxu0
    %v418 = vpack.c.bf16 %v412, %v412
    %v419 = vpack.c.bf16 %v414, %v414
    %v420 = vld [vmem:[%s4] sm:$0x3]
    %v423 = vunpack.c.l.s4 1966171168
    %v424 = vunpack.c.0.s8 %v423
    %v425 = vlaneseq
    %v426 = vshrl.u32 %v425, 7
    %v427 = vsub.s32 %v424, %v426
    %v428 = vrot.slane %v420, %v427
    %v429 = vcombine.high %v428, %v428
    %v431 = vunpack.c.l.s4 1966171168
    %v432 = vunpack.c.0.s8 %v431
    %v433 = vlaneseq
    %v434 = vshrl.u32 %v433, 7
    %v435 = vsub.s32 %v432, %v434
    %v436 = vrot.slane %v428, %v435
    %v438 = vunpack.c.l.s4 1966171168
    %v439 = vunpack.c.0.s8 %v438
    %v440 = vlaneseq
    %v441 = vshrl.u32 %v440, 7
    %v442 = vsub.s32 %v439, %v441
    %v443 = vrot.slane %v429, %v442
    %v445 = vpack.i.b16 %v436, %v436
    %v447 = vlaneseq
    %v448 = vshrl.u32 %v447, 7
    %v449 = vsub.s32 0, %v448
    %v450 = vrot.slane %v445, %v449
    %v452 = vpack.i.b16 %v443, %v443
    %v454 = vlaneseq
    %v455 = vshrl.u32 %v454, 7
    %v456 = vsub.s32 0, %v455
    %v457 = vrot.slane %v452, %v456
    %v458 = vadd.bf16 %v418, %v450
    %v459 = vadd.bf16 %v419, %v457
    %v460 = vmax.bf16 %v458, 0
    %v461 = vmax.bf16 %v459, 0
    %v462 = vld [vmem:[%s5] sm:$0x3]
    %v463 = vld [vmem:[#allocation2] sm:$0x1]
    %465 = vset.pattern.permute.xlu0 0
    %466 = vperm.xlu0 %465, %v463
    %v467 = vpop.permute.xlu0 %466
    %v469 = vlaneseq
    %v470 = vshrl.u32 %v469, 7
    %v471 = vsub.s32 0, %v470
    %v472 = vrot.slane %v467, %v471
    %v475 = vunpack.c.l.s4 1966171168
    %v476 = vunpack.c.0.s8 %v475
    %v477 = vlaneseq
    %v478 = vshrl.u32 %v477, 7
    %v479 = vsub.s32 %v476, %v478
    %v480 = vrot.slane %v462, %v479
    %v481 = vcombine.high %v480, %v480
    %v483 = vunpack.c.l.s4 1966171168
    %v484 = vunpack.c.0.s8 %v483
    %v485 = vlaneseq
    %v486 = vshrl.u32 %v485, 7
    %v487 = vsub.s32 %v484, %v486
    %v488 = vrot.slane %v480, %v487
    %v490 = vunpack.c.l.s4 1966171168
    %v491 = vunpack.c.0.s8 %v490
    %v492 = vlaneseq
    %v493 = vshrl.u32 %v492, 7
    %v494 = vsub.s32 %v491, %v493
    %v495 = vrot.slane %v481, %v494
    %498 = vmatprep.subr.bf16.mxu0 0
    %499 = vmatpush1.bf16.xpose.msra.mxu0 0
    %500 = vmatprep.subr.bf16.mxu0 0
    %501 = vmatpush1.bf16.xpose.msra.mxu0 0
    %502 = vmatprep.subr.bf16.mxu0 0
    %503 = vmatpush1.bf16.xpose.msra.mxu0 0
    %504 = vmatprep.subr.bf16.mxu0 0
    %505 = vmatpush1.bf16.xpose.msra.mxu0 0
    %506 = vmatprep.subr.bf16.mxu0 0
    %507 = vmatpush1.bf16.xpose.msra.mxu0 0
    %508 = vmatprep.subr.bf16.mxu0 0
    %509 = vmatpush1.bf16.xpose.msra.mxu0 0
    %510 = vmatprep.subr.bf16.mxu0 0
    %511 = vmatpush1.bf16.xpose.msra.mxu0 0
    %512 = vmatprep.subr.bf16.mxu0 %v461
    %513 = vmatpush1.bf16.xpose.msra.mxu0 %v460
    %514 = vmatprep.subr.bf16.mxu0 0
    %515 = vmatpush2.bf16.xpose.msra.mxu0 0
    %516 = vmatprep.subr.bf16.mxu0 0
    %517 = vmatpush2.bf16.xpose.msra.mxu0 0
    %518 = vmatprep.subr.bf16.mxu0 0
    %519 = vmatpush2.bf16.xpose.msra.mxu0 0
    %520 = vmatprep.subr.bf16.mxu0 0
    %521 = vmatpush2.bf16.xpose.msra.mxu0 0
    %522 = vmatprep.subr.bf16.mxu0 0
    %523 = vmatpush2.bf16.xpose.msra.mxu0 0
    %524 = vmatprep.subr.bf16.mxu0 0
    %525 = vmatpush2.bf16.xpose.msra.mxu0 0
    %526 = vmatprep.subr.bf16.mxu0 0
    %527 = vmatpush2.bf16.xpose.msra.mxu0 0
    %528 = vmatprep.subr.bf16.mxu0 0
    %529 = vmatpush2.bf16.xpose.msra.mxu0 0
    %530 = vmatprep.mubr.bf16.mxu0 %v495
    %531 = vmatmul.mubr.bf16.gmra.mxu0 %v488
    %v532 = vpop.f32.mrf.mxu0
    %v533 = vadd.f32 %v472, %v532
    %v534 = vpop.f32.mrf.mxu0
    %v535 = vpop.f32.mrf.mxu0
    %v536 = vpop.f32.mrf.mxu0
    %537 = vdwg.mxu0
    %vm538 = vcmask 57344
    %539 = vst.msk [vmem:[#allocation9] sm:$0x1] %vm538, %v533
    // Predicated region
    $region42: #{tpu_custom_call.1} parent=1 // pred_check
      _
    $region43: #{tpu_custom_call.1} parent=1 // pred_check_branch
      %541 = sbr.rel (0) target = $region45
    $region44: #{tpu_custom_call.1} parent=1 // pred_region
      %s543 = ssub.s32 16, 16
      %544 = vsyncadd [#allocation5], %s543
      %s546 = sshll.u32 [#allocation9], 4
      %s547 = int_to_ptr.vmem [resolvable:$true] %s546
      %549 = dma.vmem_to_hbm [thread:$0]  %s547, 16, %s7, [#allocation5]
    $region45: #{tpu_custom_call.1} parent=1 // pred_fallthru
      _
    // Predicated region
    $region46: #{tpu_custom_call.1} parent=1 // pred_check
      _
    $region47: #{tpu_custom_call.1} parent=1 // pred_check_branch
      %551 = sbr.rel (0) target = $region49
    $region48: #{tpu_custom_call.1} parent=1 // pred_region
      %552 = dma.done [#allocation5], 16
    $region49: #{tpu_custom_call.1} parent=1 // pred_fallthru
      _
    %553 = vsyncpa [#allocation4], 1
    %554 = vsyncpa [#allocation7], 1
    %555 = vsyncpa [#allocation5], 1

</llo_original>
